<compile_context>
chip_gen: v5e
topology: v5e:2x2
jax: 0.10.0
libtpu: 0.0.40
codegen_flags: <defaults>
</compile_context>

<pallas_src>
import functools

import jax
import jax.numpy as jnp
from jax.experimental import pallas as pl
from jax.experimental.pallas import tpu as pltpu


def _elementwise_kernel(x_ref, o_ref):
    x = x_ref[...]
    # (((x + 2) - 1) * 3) / 4  -- division by 4 expressed as *0.25 (bit-exact)
    y = x + jnp.asarray(2, x.dtype)
    y = y - jnp.asarray(1, x.dtype)
    y = y * jnp.asarray(3, x.dtype)
    y = y * jnp.asarray(0.25, x.dtype)
    o_ref[...] = y.astype(o_ref.dtype)


_LANE = 128
_MAX_COLS = 4096                          # lane-dense but bounded so rows stay blockable
_TARGET_BLOCK_BYTES = 4 * 1024 * 1024     # ~4 MiB input block (safe on v5e/v6e/v7x)
_MIN_GRID = 4                             # >= 2 steps per TensorCore on v7x (2 TCs/chip)
_MIN_SPLIT_BYTES = 2 * 1024 * 1024        # only force-split tensors >= 2 MiB
_VMEM_CAP_BYTES = 32 * 1024 * 1024        # v7x scoped-VMEM ceiling; fine on v5e/v6e too


def _pick_cols(total):
    """Largest multiple of 128 that divides `total`, capped at _MAX_COLS."""
    t = total // _LANE
    g_max = min(t, _MAX_COLS // _LANE)
    for g in range(g_max, 0, -1):
        if t % g == 0:
            return g * _LANE
    return _LANE


def _choose_block_rows(rows, cols, itemsize):
    """Block rows: ~_TARGET_BLOCK_BYTES per block, dtype-aware sublane multiple,
    and at least _MIN_GRID grid steps for tensors big enough to split."""
    sub_mult = 8 * max(1, 4 // itemsize)  # 8 for f32, 16 for bf16/f16, 32 for int8/fp8
    if rows <= sub_mult:
        return rows                       # single full-dim block (always legal)

    row_bytes = cols * itemsize
    tgt = max(1, _TARGET_BLOCK_BYTES // row_bytes)
    tgt = max(sub_mult, (tgt // sub_mult) * sub_mult)

    total_bytes = rows * row_bytes
    if total_bytes >= _MIN_SPLIT_BYTES:
        # Keep the grid at >= _MIN_GRID steps so both v7x TensorCores get work.
        per_step = -(-rows // _MIN_GRID)              # ceil(rows / _MIN_GRID)
        per_step = max(sub_mult, (per_step // sub_mult) * sub_mult)
        tgt = min(tgt, per_step)

    return min(tgt, rows)


def _run_2d(flat2d):
    rows, cols = flat2d.shape
    itemsize = flat2d.dtype.itemsize

    block_rows = _choose_block_rows(rows, cols, itemsize)
    grid = (pl.cdiv(rows, block_rows),)

    block_bytes = block_rows * cols * itemsize
    # in + out, each double-buffered, plus headroom; bounded by the v7x ceiling.
    vmem_limit = min(_VMEM_CAP_BYTES,
                     max(16 * 1024 * 1024, 4 * block_bytes + (2 << 20)))

    return pl.pallas_call(
        _elementwise_kernel,
        out_shape=jax.ShapeDtypeStruct((rows, cols), flat2d.dtype),
        grid=grid,
        in_specs=[pl.BlockSpec((block_rows, cols), lambda i: (i, 0))],
        out_specs=pl.BlockSpec((block_rows, cols), lambda i: (i, 0)),
        compiler_params=pltpu.CompilerParams(
            dimension_semantics=("parallel",),
            vmem_limit_bytes=vmem_limit,
        ),
    )(flat2d)


def _forward_impl(x):
    orig_shape = x.shape
    total = x.size
    if total == 0:
        return x

    if total % _LANE == 0:
        # Common case: pure metadata reshape to a lane-dense 2D slab — no pad,
        # no slice, no extra HBM pass.
        cols = _pick_cols(total)
        out = _run_2d(x.reshape(total // cols, cols))
        return out.reshape(orig_shape)

    # Rare fallback: run the kernel on the 128-aligned prefix and compute the
    # <128-element tail in plain JAX (avoids the old pad+slice extra HBM passes).
    flat = x.reshape(-1)
    aligned = (total // _LANE) * _LANE
    tail = flat[aligned:]
    tail_out = (((tail + jnp.asarray(2, x.dtype)) - jnp.asarray(1, x.dtype))
                * jnp.asarray(3, x.dtype)) * jnp.asarray(0.25, x.dtype)
    if aligned == 0:
        return tail_out.reshape(orig_shape)
    cols = _pick_cols(aligned)
    head_out = _run_2d(flat[:aligned].reshape(aligned // cols, cols))
    return jnp.concatenate([head_out.reshape(-1), tail_out]).reshape(orig_shape)


@functools.partial(jax.jit)
def pt_module_forward(x):
    """Apply (((x+2)-1)*3)/4 elementwise via a Pallas TPU kernel (any-rank input)."""
    # PyTorch `/ 4` promotes integer / bool tensors to float; match that here so
    # the *0.25 in the kernel never degenerates to *0 for int dtypes.
    if not jnp.issubdtype(x.dtype, jnp.floating):
        x = x.astype(jnp.float32)
    return _forward_impl(x)


if __name__ == "__main__":
    key = jax.random.PRNGKey(0)
    # Shape consistent with a typical NCHW input: batch=2, channels=4, 16x16.
    x = jax.random.normal(key, (2, 4, 16, 16), dtype=jnp.float32)

    y = pt_module_forward(x)
    y = jax.block_until_ready(y)

    # Reference check in plain JAX.
    y_ref = (((x + 2) - 1) * 3) / 4
    assert y.shape == x.shape and y.dtype == x.dtype
    assert jnp.allclose(y, y_ref, atol=1e-6, rtol=1e-6), "mismatch vs reference"

    print("KERNEL_OK")
</pallas_src>

<mosaic_0001>
module attributes {stable_mosaic.version = 11 : i64} {
  func.func @_elementwise_kernel(%arg0: i32, %arg1: memref<1x2048xf32, #tpu.memory_space<vmem>>, %arg2: memref<1x2048xf32, #tpu.memory_space<vmem>>) attributes {dimension_semantics = [#tpu.dimension_semantics<parallel>], iteration_bounds = array<i64: 1>, scalar_prefetch = 0 : i64, scratch_operands = 0 : i64, tpu.core_type = #tpu.core_type<tc>, window_params = [{transform_indices = @transform_0, window_bounds = array<i64: 1, 2048>}, {transform_indices = @transform_1, window_bounds = array<i64: 1, 2048>}]} {
    %c0 = arith.constant 0 : index
    %c0_0 = arith.constant 0 : index
    %0 = vector.load %arg1[%c0, %c0_0] : memref<1x2048xf32, #tpu.memory_space<vmem>>, vector<1x2048xf32>
    %cst = arith.constant 2.000000e+00 : f32
    %1 = vector.broadcast %cst : f32 to vector<1x2048xf32>
    %2 = arith.addf %0, %1 : vector<1x2048xf32>
    %cst_1 = arith.constant 1.000000e+00 : f32
    %3 = vector.broadcast %cst_1 : f32 to vector<1x2048xf32>
    %4 = arith.subf %2, %3 : vector<1x2048xf32>
    %cst_2 = arith.constant 3.000000e+00 : f32
    %5 = vector.broadcast %cst_2 : f32 to vector<1x2048xf32>
    %6 = arith.mulf %4, %5 : vector<1x2048xf32>
    %cst_3 = arith.constant 2.500000e-01 : f32
    %7 = vector.broadcast %cst_3 : f32 to vector<1x2048xf32>
    %8 = arith.mulf %6, %7 : vector<1x2048xf32>
    %c0_4 = arith.constant 0 : index
    %c0_5 = arith.constant 0 : index
    %9 = vector.load %arg2[%c0_4, %c0_5] : memref<1x2048xf32, #tpu.memory_space<vmem>>, vector<1x2048xf32>
    tpu.vector_store %arg2[%c0_4, %c0_5], %8 {strides = array<i32>} : memref<1x2048xf32, #tpu.memory_space<vmem>>, vector<1x2048xf32>,
    return
  }
  func.func @transform_0(%arg0: i32) -> (i32, i32) {
    %c0_i32 = arith.constant 0 : i32
    %c0_i32_0 = arith.constant 0 : i32
    return %arg0, %c0_i32 : i32, i32
  }
  func.func @transform_1(%arg0: i32) -> (i32, i32) {
    %c0_i32 = arith.constant 0 : i32
    %c0_i32_0 = arith.constant 0 : i32
    return %arg0, %c0_i32 : i32, i32
  }
}

</mosaic_0001>

<llo_original>
// kernel: pt_module_forward.1
$region0: #{pt_module_forward.1}
  #allocation0 [shape = 'u32[]', space=smem, size = 0x4, offset = 0x4, fixed_abs, tag = 'smem constant byte address 0x4 - core index']
  #allocation1 [shape = 'u32[72,128]{1,0:T(1,128)}', space=vmem, size = 0x9000, scoped, tag = 'internal scratch']
  %s0 = inlined_call_operand.vmem [shape: f32[1,2048], index: 0, kind: input, shape index: {}]
  %s1 = inlined_call_operand.vmem [shape: f32[1,2048], index: 1, kind: output, shape index: {}]
  %s2 = sld [smem:[#allocation0]]
  $region14: #{pt_module_forward.1} parent=0
    _
  %s4 = ssub.s32 1, %s2
  %s5 = scalar_select 0, %s4, %s2
  // Predicated region
  $region2: #{pt_module_forward.1} parent=0 // pred_check
    _
  $region3: #{pt_module_forward.1} parent=0 // pred_check_branch
    %7 = sbr.rel (0) target = $region5
  $region4: #{pt_module_forward.1} parent=0 // pred_region
    _
  $region5: #{pt_module_forward.1} parent=0 // pred_fallthru
    _
  %v8 = vld [vmem:[%s0] sm:$0xff]
  %v9 = vld [vmem:[%s0 + $0x8] sm:$0xff]
  %v10 = vadd.f32 %v8, 2.0
  %v11 = vadd.f32 %v9, 2.0
  %v12 = vsub.f32 %v10, 1.0
  %v13 = vsub.f32 %v11, 1.0
  %v14 = vmul.f32 %v12, 3.0
  %v15 = vmul.f32 %v13, 3.0
  %v16 = vmul.f32 %v14, 0.25
  %v17 = vmul.f32 %v15, 0.25
  %18 = vst [vmem:[%s1] sm:$0xff] %v16
  %19 = vst [vmem:[%s1 + $0x8] sm:$0xff] %v17
  // Predicated region
  $region6: #{pt_module_forward.1} parent=0 // pred_check
    _
  $region7: #{pt_module_forward.1} parent=0 // pred_check_branch
    %21 = sbr.rel (0) target = $region9
  $region8: #{pt_module_forward.1} parent=0 // pred_region
    _
  $region9: #{pt_module_forward.1} parent=0 // pred_fallthru
    _
  // Predicated region
  $region10: #{pt_module_forward.1} parent=0 // pred_check
    _
  $region11: #{pt_module_forward.1} parent=0 // pred_check_branch
    %23 = sbr.rel (0) target = $region13
  $region12: #{pt_module_forward.1} parent=0 // pred_region
    _
  $region13: #{pt_module_forward.1} parent=0 // pred_fallthru
    _

</llo_original>
